<compile_context>
chip_gen: v7x
topology: tpu7x:2x2x1
jax: 0.10.0
libtpu: 0.0.40
codegen_flags: <defaults>
</compile_context>

<pallas_src>
import functools

import jax
import jax.numpy as jnp
from jax.experimental import pallas as pl
from jax.experimental.pallas import tpu as pltpu


def _round_up(n, m):
    return ((n + m - 1) // m) * m


def value_func_kernel(x_ref, w1_ref, b1_ref, w2_ref, b2_ref, o_ref):
    # x arrives in its native dtype (f32) — cast to the matmul compute dtype
    # (bf16 path) here, in VMEM, instead of materializing a padded copy in HBM.
    x = x_ref[...].astype(w1_ref.dtype)
    # Layer 1 (MXU): (TB, OBS) @ (OBS, H) -> (TB, H), f32 accumulate.
    h = jnp.dot(x, w1_ref[...], preferred_element_type=jnp.float32)
    h = jax.nn.sigmoid(h + b1_ref[...])              # bias + sigmoid in f32
    # Layer 2: contract hidden on both operands -> lane-dense (1, TB) row
    # (batch on the lane axis), avoiding masked (TB, 1) stores.
    y = jax.lax.dot_general(
        w2_ref[...], h,
        dimension_numbers=(((1,), (1,)), ((), ())),
        preferred_element_type=jnp.float32)          # (1, TB)
    o_ref[...] = jax.nn.sigmoid(y + b2_ref[...])


def prep_params(w1, b1, w2, b2, *, compute_dtype=jnp.bfloat16):
    """One-time parameter prep (hoisted out of the per-call path).

    w1: (H, OBS) -> transposed (OBS, H) in compute_dtype (NOT padded: Mosaic
        pads the K dim in VMEM, keeping HBM traffic at the true 198 features).
    b1: (H,) -> (1, H) f32;  w2: (1, H) -> (1, H) f32;  b2: (1,) -> (1, 1) f32.
    """
    hidden, _ = w1.shape
    w1_t = jnp.asarray(w1, jnp.float32).T.astype(compute_dtype)   # (OBS, H)
    b1_2d = jnp.asarray(b1, jnp.float32).reshape(1, hidden)
    w2_2d = jnp.asarray(w2, jnp.float32).reshape(1, hidden)
    b2_2d = jnp.asarray(b2, jnp.float32).reshape(1, 1)
    return w1_t, b1_2d, w2_2d, b2_2d


@functools.partial(jax.jit, static_argnames=("block_b", "min_pallas_batch"))
def value_func_forward(x, w1_t, b1, w2, b2, *, block_b=8192,
                       min_pallas_batch=1024):
    """x: (B, obs_dim) f32. Returns (B, 1) f32 = sigmoid(L2(sigmoid(L1(x))))."""
    B, obs = x.shape
    obs_w, hidden = w1_t.shape
    assert obs == obs_w

    # Small-batch fast path: at tiny B the fixed pallas_call/grid overhead
    # dominates and fused XLA is strictly faster than the kernel.
    if B < min_pallas_batch:
        h = jax.nn.sigmoid(
            jnp.dot(x.astype(w1_t.dtype), w1_t,
                    preferred_element_type=jnp.float32) + b1)
        return jax.nn.sigmoid(
            jnp.dot(h, w2.T, preferred_element_type=jnp.float32) + b2)

    # Batch tiling: large tiles amortize the ~0.35 us per-step overhead;
    # lane-dense output blocks (multiple of 128).  Ragged last tile via cdiv —
    # x itself is never padded or copied in HBM.
    tb = min(block_b, _round_up(B, 128))
    if jnp.dtype(w1_t.dtype).itemsize >= 4:
        tb = min(tb, 2048)   # f32 check path: stay under v5e's 16 MiB scoped VMEM
    grid_b = pl.cdiv(B, tb)
    b_out = grid_b * tb      # output padded to whole tiles (kernel-written, cheap)

    out_row = pl.pallas_call(
        value_func_kernel,
        out_shape=jax.ShapeDtypeStruct((1, b_out), jnp.float32),
        grid_spec=pltpu.PrefetchScalarGridSpec(
            num_scalar_prefetch=0,
            grid=(grid_b,),
            in_specs=[
                pl.BlockSpec((tb, obs), lambda i: (i, 0)),      # x: streamed, native f32
                pl.BlockSpec((obs, hidden), lambda i: (0, 0)),  # W1^T: resident
                pl.BlockSpec((1, hidden), lambda i: (0, 0)),    # b1: resident
                pl.BlockSpec((1, hidden), lambda i: (0, 0)),    # W2 row: resident
                pl.BlockSpec((1, 1), lambda i: (0, 0)),         # b2: resident
            ],
            out_specs=pl.BlockSpec((1, tb), lambda i: (0, i)),  # lane-dense
        ),
        compiler_params=pltpu.CompilerParams(
            dimension_semantics=("parallel",)),                 # v7x megacore
    )(x, w1_t, b1, w2, b2)

    # (1, b_out) -> (B, 1): slice + free row-major reshape (junk lanes from the
    # ragged last input tile land beyond B and are dropped here).
    return out_row[0, :B].reshape(B, 1)


if __name__ == "__main__":
    OBS_DIM = 198      # backgammon observation space
    HIDDEN = 32

    key = jax.random.PRNGKey(0)
    kx8, kx256, kx300, kw1, kb1, kw2, kb2 = jax.random.split(key, 7)

    # Deterministic synthetic parameters (PyTorch-like uniform(-1/sqrt(fan_in))).
    bound1 = 1.0 / jnp.sqrt(OBS_DIM)
    bound2 = 1.0 / jnp.sqrt(HIDDEN)
    w1 = jax.random.uniform(kw1, (HIDDEN, OBS_DIM), jnp.float32, -bound1, bound1)
    b1 = jax.random.uniform(kb1, (HIDDEN,), jnp.float32, -bound1, bound1)
    w2 = jax.random.uniform(kw2, (1, HIDDEN), jnp.float32, -bound2, bound2)
    b2 = jax.random.uniform(kb2, (1,), jnp.float32, -bound2, bound2)

    def reference(x):
        h = jax.nn.sigmoid(x @ w1.T + b1)
        return jax.nn.sigmoid(h @ w2.T + b2)

    p32 = prep_params(w1, b1, w2, b2, compute_dtype=jnp.float32)
    pbf = prep_params(w1, b1, w2, b2, compute_dtype=jnp.bfloat16)

    # 1) Exact-semantics check through the Pallas kernel (f32 compute path),
    #    multi-step grid: B=256, tb=128 -> 2 full tiles.
    x256 = jax.random.uniform(kx256, (256, OBS_DIM), jnp.float32)
    out32 = jax.block_until_ready(
        value_func_forward(x256, *p32, block_b=128, min_pallas_batch=0))
    assert out32.shape == (256, 1)
    assert jnp.allclose(out32, reference(x256), atol=1e-5, rtol=1e-5)

    # 2) Performance config (bf16 matmul inputs, f32 activations) with a
    #    ragged batch: B=300, tb=128 -> 3 tiles, last one partial.
    x300 = jax.random.uniform(kx300, (300, OBS_DIM), jnp.float32)
    outbf = jax.block_until_ready(
        value_func_forward(x300, *pbf, block_b=128, min_pallas_batch=0))
    assert outbf.shape == (300, 1)
    assert jnp.allclose(outbf, reference(x300), atol=3e-2, rtol=3e-2)  # ~1e-3 typ.

    # 3) Small-batch XLA fast path (default routing for tiny B, e.g. TD rollout).
    x8 = jax.random.uniform(kx8, (8, OBS_DIM), jnp.float32)
    out_fast = jax.block_until_ready(value_func_forward(x8, *pbf))
    assert out_fast.shape == (8, 1)
    assert jnp.allclose(out_fast, reference(x8), atol=3e-2, rtol=3e-2)

    print("KERNEL_OK")
</pallas_src>

<mosaic_0001>
module attributes {stable_mosaic.version = 11 : i64} {
  func.func @value_func_kernel(%arg0: i32, %arg1: memref<128x198xf32, #tpu.memory_space<vmem>>, %arg2: memref<198x32xf32, #tpu.memory_space<vmem>>, %arg3: memref<1x32xf32, #tpu.memory_space<vmem>>, %arg4: memref<1x32xf32, #tpu.memory_space<vmem>>, %arg5: memref<1x1xf32, #tpu.memory_space<vmem>>, %arg6: memref<1x128xf32, #tpu.memory_space<vmem>>) attributes {dimension_semantics = [#tpu.dimension_semantics<parallel>], iteration_bounds = array<i64: 2>, scalar_prefetch = 0 : i64, scratch_operands = 0 : i64, tpu.core_type = #tpu.core_type<tc>, window_params = [{transform_indices = @transform_0, window_bounds = array<i64: 128, 198>}, {pipeline_mode = #tpu.pipeline_mode<synchronous>, transform_indices = @transform_1, window_bounds = array<i64: 198, 32>}, {pipeline_mode = #tpu.pipeline_mode<synchronous>, transform_indices = @transform_2, window_bounds = array<i64: 1, 32>}, {pipeline_mode = #tpu.pipeline_mode<synchronous>, transform_indices = @transform_3, window_bounds = array<i64: 1, 32>}, {pipeline_mode = #tpu.pipeline_mode<synchronous>, transform_indices = @transform_4, window_bounds = array<i64: 1, 1>}, {transform_indices = @transform_5, window_bounds = array<i64: 1, 128>}]} {
    %c0 = arith.constant 0 : index
    %c0_0 = arith.constant 0 : index
    %0 = vector.load %arg1[%c0, %c0_0] : memref<128x198xf32, #tpu.memory_space<vmem>>, vector<128x198xf32>
    %c0_1 = arith.constant 0 : index
    %c0_2 = arith.constant 0 : index
    %1 = vector.load %arg2[%c0_1, %c0_2] : memref<198x32xf32, #tpu.memory_space<vmem>>, vector<198x32xf32>
    %cst = arith.constant dense<0.000000e+00> : vector<128x32xf32>
    %2 = tpu.matmul %0, %1, %cst {dimension_numbers = #tpu.dot_dimension_numbers<[1], [0], [0], [1], [0, 0, 1, 1], [], []>} : vector<128x198xf32>, vector<198x32xf32>, vector<128x32xf32> -> vector<128x32xf32>
    %c0_3 = arith.constant 0 : index
    %c0_4 = arith.constant 0 : index
    %3 = vector.load %arg3[%c0_3, %c0_4] : memref<1x32xf32, #tpu.memory_space<vmem>>, vector<1x32xf32>
    %4 = vector.broadcast %3 : vector<1x32xf32> to vector<128x32xf32>
    %5 = arith.addf %2, %4 : vector<128x32xf32>
    %6 = arith.negf %5 : vector<128x32xf32>
    %7 = math.exp %6 : vector<128x32xf32>
    %cst_5 = arith.constant 1.000000e+00 : f32
    %8 = vector.broadcast %cst_5 : f32 to vector<128x32xf32>
    %9 = arith.addf %8, %7 : vector<128x32xf32>
    %10 = arith.divf %8, %9 : vector<128x32xf32>
    %c0_6 = arith.constant 0 : index
    %c0_7 = arith.constant 0 : index
    %11 = vector.load %arg4[%c0_6, %c0_7] : memref<1x32xf32, #tpu.memory_space<vmem>>, vector<1x32xf32>
    %cst_8 = arith.constant dense<0.000000e+00> : vector<1x128xf32>
    %12 = tpu.matmul %11, %10, %cst_8 {dimension_numbers = #tpu.dot_dimension_numbers<[1], [1], [0], [0], [0, 0, 1, 0], [], []>} : vector<1x32xf32>, vector<128x32xf32>, vector<1x128xf32> -> vector<1x128xf32>
    %c0_9 = arith.constant 0 : index
    %c0_10 = arith.constant 0 : index
    %13 = vector.load %arg5[%c0_9, %c0_10] : memref<1x1xf32, #tpu.memory_space<vmem>>, vector<1x1xf32>
    %14 = vector.broadcast %13 : vector<1x1xf32> to vector<1x128xf32>
    %15 = arith.addf %12, %14 : vector<1x128xf32>
    %16 = arith.negf %15 : vector<1x128xf32>
    %17 = math.exp %16 : vector<1x128xf32>
    %cst_11 = arith.constant 1.000000e+00 : f32
    %18 = vector.broadcast %cst_11 : f32 to vector<1x128xf32>
    %19 = arith.addf %18, %17 : vector<1x128xf32>
    %20 = arith.divf %18, %19 : vector<1x128xf32>
    %c0_12 = arith.constant 0 : index
    %c0_13 = arith.constant 0 : index
    %21 = vector.load %arg6[%c0_12, %c0_13] : memref<1x128xf32, #tpu.memory_space<vmem>>, vector<1x128xf32>
    tpu.vector_store %arg6[%c0_12, %c0_13], %20 {strides = array<i32>} : memref<1x128xf32, #tpu.memory_space<vmem>>, vector<1x128xf32>,
    return
  }
  func.func @transform_0(%arg0: i32) -> (i32, i32) {
    %c0_i32 = arith.constant 0 : i32
    %c0_i32_0 = arith.constant 0 : i32
    return %arg0, %c0_i32 : i32, i32
  }
  func.func @transform_1(%arg0: i32) -> (i32, i32) {
    %c0_i32 = arith.constant 0 : i32
    %c0_i32_0 = arith.constant 0 : i32
    %c0_i32_1 = arith.constant 0 : i32
    return %c0_i32, %c0_i32_0 : i32, i32
  }
  func.func @transform_2(%arg0: i32) -> (i32, i32) {
    %c0_i32 = arith.constant 0 : i32
    %c0_i32_0 = arith.constant 0 : i32
    %c0_i32_1 = arith.constant 0 : i32
    return %c0_i32, %c0_i32_0 : i32, i32
  }
  func.func @transform_3(%arg0: i32) -> (i32, i32) {
    %c0_i32 = arith.constant 0 : i32
    %c0_i32_0 = arith.constant 0 : i32
    %c0_i32_1 = arith.constant 0 : i32
    return %c0_i32, %c0_i32_0 : i32, i32
  }
  func.func @transform_4(%arg0: i32) -> (i32, i32) {
    %c0_i32 = arith.constant 0 : i32
    %c0_i32_0 = arith.constant 0 : i32
    %c0_i32_1 = arith.constant 0 : i32
    return %c0_i32, %c0_i32_0 : i32, i32
  }
  func.func @transform_5(%arg0: i32) -> (i32, i32) {
    %c0_i32 = arith.constant 0 : i32
    %c0_i32_0 = arith.constant 0 : i32
    return %c0_i32, %arg0 : i32, i32
  }
}

</mosaic_0001>

<llo_original>
// kernel: value_func_forward.1
$region0: #{value_func_forward.1}
  #allocation0 [shape = 'u32[]', space=smem, size = 0x4, offset = 0x4, fixed_abs, tag = 'smem constant byte address 0x4 - core index']
  #allocation1 [shape = 'u32[144,128]{1,0:T(1,128)}', space=vmem, size = 0x12000, scoped, tag = 'internal scratch']
  #allocation2 [shape = 'f32[1,1]{1,0:T(1,128)S(1)}', space=vmem, size = 0x200, scoped, tag = 'scoped memory for value_func_forward.1']
  %s0 = inlined_call_operand.vmem [shape: f32[256,198], index: 0, kind: input, shape index: {}]
  %s1 = inlined_call_operand.vmem [shape: f32[198,32], index: 1, kind: input, shape index: {}]
  %s2 = inlined_call_operand.vmem [shape: f32[1,32], index: 2, kind: input, shape index: {}]
  %s3 = inlined_call_operand.vmem [shape: f32[1,32], index: 3, kind: input, shape index: {}]
  %s4 = inlined_call_operand.<no memory space> [shape: f32[1,1], index: 4, kind: input, shape index: {}]
  %s5 = inlined_call_operand.hbm [shape: f32[1,256], index: 5, kind: output, shape index: {}]
  %s6 = sld [smem:[#allocation0]]
  $region53: #{value_func_forward.1} parent=0
    _
  %s8 = ssub.s32 1, %s6
  %s9 = scalar_select 0, %s8, %s6
  %v10 = vstv %s4
  %11 = vst [vmem:[#allocation2] sm:$0x1] %v10
  $region1: #{value_func_forward.1} parent=0
    #allocation3 [shape = 'u8[1024]{0}', space=vmem, size = 0x400, scoped, tag = 'output window, operand 0']
    #allocation4 [shape = 's32[2]{0}', space=sflag, size = 0x8, scoped, tag = 'scoped memory for value_func_forward.1']
    %12 = vsyncpa [#allocation4], 0
    %s13 = scalar_lea.sflag [#allocation4], 1
    %14 = vsyncpa %s13, 0
    loop: start=0, step=1, limit=4
    $region2: #{value_func_forward.1} parent=1 // loop_pre_header
      _
    $region3: #{value_func_forward.1} parent=1 // loop_header
      %s16 = sphi 0, %s20
      %p17 = scmp.ge.s32.totalorder %s16, 4
      %s26 = sphi 0, %s28
      %s29 = sphi 0, %s26
      %s30 = sphi 0, %s29
      %s46 = sphi 0, %s30
      %s50 = sphi 0, %s50
      %s52 = sphi 0, %s50
      %s53 = sphi 0, %s52
      %s67 = sphi 0, %s53
      %s71 = sphi 0, %s71
      %s73 = sphi 0, %s71
      %s74 = sphi 0, %s73
      %s88 = sphi 0, %s74
      %s92 = sphi 0, %s92
      %s94 = sphi 0, %s92
      %s95 = sphi 0, %s94
      %s109 = sphi 0, %s95
      %s113 = sphi 0, %s113
      %s115 = sphi 0, %s113
      %s116 = sphi 0, %s115
      %s130 = sphi 0, %s116
      %s136 = sphi 0, %s138
      %s139 = sphi 0, %s136
      %s140 = sphi 0, %s139
      %s156 = sphi 0, %s140
    $region4: #{value_func_forward.1} parent=1 // loop_header_branch
      %19 = sbr.rel (%p17) target = $region8
    $region5: #{value_func_forward.1} parent=1 // loop_body
      %s21 = ssub.s32 %s16, 1
      %s22 = ssub.s32 %s16, 2
      %s23 = sadd.s32 %s16, 1
      %s24 = ssub.s32 %s16, %s23
      %p25 = scmp.eq.s32.totalorder %s24, 0
      %s27 = sadd.s32 %s26, 1
      %s28 = scalar_select %p25, %s26, %s27
      %p31 = pneg %p25
      %p32 = scmp.eq.s32.totalorder %s16, 1
      %p33 = por %p31, %p32
      %p34 = scmp.ne.s32.totalorder %s26, %s29
      %p35 = scmp.eq.s32.totalorder %s16, 0
      %p36 = por %p34, %p35
      %p37 = scmp.ne.s32.totalorder %s26, %s29
      %p38 = scmp.eq.s32.totalorder %s21, 1
      %p39 = por %p37, %p38
      %p40 = scmp.ne.s32.totalorder %s29, %s30
      %p41 = scmp.eq.s32.totalorder %s21, 0
      %p42 = por %p40, %p41
      %p43 = scmp.ne.s32.totalorder %s29, %s30
      %p44 = scmp.eq.s32.totalorder %s22, 1
      %p45 = por %p43, %p44
      %p47 = scmp.ne.s32.totalorder %s30, %s46
      %p48 = scmp.eq.s32.totalorder %s22, 0
      %p49 = por %p47, %p48
      %s51 = sadd.s32 %s50, 1
      %p54 = scmp.eq.s32.totalorder %s16, 1
      %p55 = scmp.ne.s32.totalorder %s50, %s52
      %p56 = scmp.eq.s32.totalorder %s16, 0
      %p57 = por %p55, %p56
      %p58 = scmp.ne.s32.totalorder %s50, %s52
      %p59 = scmp.eq.s32.totalorder %s21, 1
      %p60 = por %p58, %p59
      %p61 = scmp.ne.s32.totalorder %s52, %s53
      %p62 = scmp.eq.s32.totalorder %s21, 0
      %p63 = por %p61, %p62
      %p64 = scmp.ne.s32.totalorder %s52, %s53
      %p65 = scmp.eq.s32.totalorder %s22, 1
      %p66 = por %p64, %p65
      %p68 = scmp.ne.s32.totalorder %s53, %s67
      %p69 = scmp.eq.s32.totalorder %s22, 0
      %p70 = por %p68, %p69
      %s72 = sadd.s32 %s71, 1
      %p75 = scmp.eq.s32.totalorder %s16, 1
      %p76 = scmp.ne.s32.totalorder %s71, %s73
      %p77 = scmp.eq.s32.totalorder %s16, 0
      %p78 = por %p76, %p77
      %p79 = scmp.ne.s32.totalorder %s71, %s73
      %p80 = scmp.eq.s32.totalorder %s21, 1
      %p81 = por %p79, %p80
      %p82 = scmp.ne.s32.totalorder %s73, %s74
      %p83 = scmp.eq.s32.totalorder %s21, 0
      %p84 = por %p82, %p83
      %p85 = scmp.ne.s32.totalorder %s73, %s74
      %p86 = scmp.eq.s32.totalorder %s22, 1
      %p87 = por %p85, %p86
      %p89 = scmp.ne.s32.totalorder %s74, %s88
      %p90 = scmp.eq.s32.totalorder %s22, 0
      %p91 = por %p89, %p90
      %s93 = sadd.s32 %s92, 1
      %p96 = scmp.eq.s32.totalorder %s16, 1
      %p97 = scmp.ne.s32.totalorder %s92, %s94
      %p98 = scmp.eq.s32.totalorder %s16, 0
      %p99 = por %p97, %p98
      %p100 = scmp.ne.s32.totalorder %s92, %s94
      %p101 = scmp.eq.s32.totalorder %s21, 1
      %p102 = por %p100, %p101
      %p103 = scmp.ne.s32.totalorder %s94, %s95
      %p104 = scmp.eq.s32.totalorder %s21, 0
      %p105 = por %p103, %p104
      %p106 = scmp.ne.s32.totalorder %s94, %s95
      %p107 = scmp.eq.s32.totalorder %s22, 1
      %p108 = por %p106, %p107
      %p110 = scmp.ne.s32.totalorder %s95, %s109
      %p111 = scmp.eq.s32.totalorder %s22, 0
      %p112 = por %p110, %p111
      %s114 = sadd.s32 %s113, 1
      %p117 = scmp.eq.s32.totalorder %s16, 1
      %p118 = scmp.ne.s32.totalorder %s113, %s115
      %p119 = scmp.eq.s32.totalorder %s16, 0
      %p120 = por %p118, %p119
      %p121 = scmp.ne.s32.totalorder %s113, %s115
      %p122 = scmp.eq.s32.totalorder %s21, 1
      %p123 = por %p121, %p122
      %p124 = scmp.ne.s32.totalorder %s115, %s116
      %p125 = scmp.eq.s32.totalorder %s21, 0
      %p126 = por %p124, %p125
      %p127 = scmp.ne.s32.totalorder %s115, %s116
      %p128 = scmp.eq.s32.totalorder %s22, 1
      %p129 = por %p127, %p128
      %p131 = scmp.ne.s32.totalorder %s116, %s130
      %p132 = scmp.eq.s32.totalorder %s22, 0
      %p133 = por %p131, %p132
      %s134 = ssub.s32 %s16, %s23
      %p135 = scmp.eq.s32.totalorder %s134, 0
      %s137 = sadd.s32 %s136, 1
      %s138 = scalar_select %p135, %s136, %s137
      %p141 = pneg %p135
      %p142 = scmp.eq.s32.totalorder %s16, 1
      %p143 = por %p141, %p142
      %p144 = scmp.ne.s32.totalorder %s136, %s139
      %p145 = scmp.eq.s32.totalorder %s16, 0
      %p146 = por %p144, %p145
      %p147 = scmp.ne.s32.totalorder %s136, %s139
      %p148 = scmp.eq.s32.totalorder %s21, 1
      %p149 = por %p147, %p148
      %p150 = scmp.ne.s32.totalorder %s139, %s140
      %p151 = scmp.eq.s32.totalorder %s21, 0
      %p152 = por %p150, %p151
      %p153 = scmp.ne.s32.totalorder %s139, %s140
      %p154 = scmp.eq.s32.totalorder %s22, 1
      %p155 = por %p153, %p154
      %p157 = scmp.ne.s32.totalorder %s140, %s156
      %p158 = scmp.eq.s32.totalorder %s22, 0
      %p159 = por %p157, %p158
      %p160 = scmp.le.s32.totalorder 1, %s16
      %p161 = scmp.lt.s32.totalorder %s16, 3
      %p162 = pnand %p160, %p161
      %p163 = pneg %p162
      // Predicated region
      $region9: #{value_func_forward.1} parent=5 // pred_check
        _
      $region10: #{value_func_forward.1} parent=5 // pred_check_branch
        %165 = sbr.rel (%p162) target = $region12
      $region11: #{value_func_forward.1} parent=5 // pred_region
        %s166 = ssub.s32 %s16, 1
        // Predicated region
        $region13: #{value_func_forward.1} parent=11 // pred_check
          %p167 = pneg %p63
        $region14: #{value_func_forward.1} parent=11 // pred_check_branch
          %169 = sbr.rel (%p167) target = $region16
        $region15: #{value_func_forward.1} parent=11 // pred_region
          _
        $region16: #{value_func_forward.1} parent=11 // pred_fallthru
          _
        // Predicated region
        $region17: #{value_func_forward.1} parent=11 // pred_check
          %p170 = pneg %p84
        $region18: #{value_func_forward.1} parent=11 // pred_check_branch
          %172 = sbr.rel (%p170) target = $region20
        $region19: #{value_func_forward.1} parent=11 // pred_region
          _
        $region20: #{value_func_forward.1} parent=11 // pred_fallthru
          _
        // Predicated region
        $region21: #{value_func_forward.1} parent=11 // pred_check
          %p173 = pneg %p105
        $region22: #{value_func_forward.1} parent=11 // pred_check_branch
          %175 = sbr.rel (%p173) target = $region24
        $region23: #{value_func_forward.1} parent=11 // pred_region
          _
        $region24: #{value_func_forward.1} parent=11 // pred_fallthru
          _
        // Predicated region
        $region25: #{value_func_forward.1} parent=11 // pred_check
          %p176 = pneg %p126
        $region26: #{value_func_forward.1} parent=11 // pred_check_branch
          %178 = sbr.rel (%p176) target = $region28
        $region27: #{value_func_forward.1} parent=11 // pred_region
          _
        $region28: #{value_func_forward.1} parent=11 // pred_fallthru
          _
      $region12: #{value_func_forward.1} parent=5 // pred_fallthru
        _
      %p179 = scmp.lt.s32.totalorder %s16, 2
      // Predicated region
      $region29: #{value_func_forward.1} parent=5 // pred_check
        %p180 = pneg %p179
      $region30: #{value_func_forward.1} parent=5 // pred_check_branch
        %182 = sbr.rel (%p180) target = $region32
      $region31: #{value_func_forward.1} parent=5 // pred_region
        // Predicated region
        $region33: #{value_func_forward.1} parent=31 // pred_check
          %p183 = pneg %p36
        $region34: #{value_func_forward.1} parent=31 // pred_check_branch
          %185 = sbr.rel (%p183) target = $region36
        $region35: #{value_func_forward.1} parent=31 // pred_region
          %s186 = smul.u32 16, %s16
          %p187 = scmp.lt.s32.totalorder %s186, 31
          %s188 = scalar_select %p187, %s186, 31
          %s189 = smul.addr %s188, 2
          %s190 = smul.addr %s189, 8
          %s191 = scalar_lea.vmem %s0, %s190
          %s192 = smul.u32 16, %s16
        $region36: #{value_func_forward.1} parent=31 // pred_fallthru
          _
      $region32: #{value_func_forward.1} parent=5 // pred_fallthru
        _
      %p193 = scmp.le.s32.totalorder 1, %s16
      %p194 = scmp.lt.s32.totalorder %s16, 3
      %p195 = pnand %p193, %p194
      %p196 = pneg %p195
      // Predicated region
      $region37: #{value_func_forward.1} parent=5 // pred_check
        _
      $region38: #{value_func_forward.1} parent=5 // pred_check_branch
        %198 = sbr.rel (%p195) target = $region40
      $region39: #{value_func_forward.1} parent=5 // pred_region
        %s199 = ssub.s32 %s16, 1
        %s200 = smul.u32 16, %s21
        %p201 = scmp.lt.s32.totalorder %s200, 31
        %s202 = scalar_select %p201, %s200, 31
        %s203 = smul.addr %s202, 2
        %s204 = smul.addr %s203, 8
        %s205 = scalar_lea.vmem %s0, %s204
        %p206 = pneg %p42
        %p207 = pneg %p39
        %p208 = pneg %p63
        %p209 = pneg %p60
        %p210 = pneg %p84
        %p211 = pneg %p81
        %p212 = pneg %p105
        %p213 = pneg %p102
        %p214 = pneg %p126
        %p215 = pneg %p123
        %p216 = pneg %p152
        %p217 = pneg %p149
        %s218 = sand.u32 %s139, 1
        %s219 = scalar_lea.sflag [#allocation4], %s218
        %s220 = sand.u32 %s139, 1
        %s221 = scalar_lea.vmem [#allocation3], %s220
        %s222 = smul.u32 16, %s21
        %p223 = scmp.lt.s32.totalorder %s222, 31
        %s224 = scalar_select %p223, %s222, 31
        %s225 = smul.addr %s224, 2
        %s226 = smul.addr %s225, 8
        %s227 = scalar_lea.vmem %s0, %s226
        %s228 = smul.u32 16, %s21
        %v229 = vld [vmem:[%s227] sm:$0xff]
        %v230 = vld [vmem:[%s227 + $0x8] sm:$0xff]
        %v231 = vld [vmem:[%s227 + $0x10] sm:$0xff]
        %v232 = vld [vmem:[%s227 + $0x18] sm:$0xff]
        %v233 = vld [vmem:[%s227 + $0x20] sm:$0xff]
        %v234 = vld [vmem:[%s227 + $0x28] sm:$0xff]
        %v235 = vld [vmem:[%s227 + $0x30] sm:$0xff]
        %v236 = vld [vmem:[%s227 + $0x38] sm:$0xff]
        %v237 = vld [vmem:[%s227 + $0x40] sm:$0xff]
        %v238 = vld [vmem:[%s227 + $0x48] sm:$0xff]
        %v239 = vld [vmem:[%s227 + $0x50] sm:$0xff]
        %v240 = vld [vmem:[%s227 + $0x58] sm:$0xff]
        %v241 = vld [vmem:[%s227 + $0x60] sm:$0xff]
        %v242 = vld [vmem:[%s227 + $0x68] sm:$0xff]
        %v243 = vld [vmem:[%s227 + $0x70] sm:$0xff]
        %v244 = vld [vmem:[%s227 + $0x78] sm:$0xff]
        %v245 = vld [vmem:[%s227 + $0x80] sm:$0xff]
        %v246 = vld [vmem:[%s227 + $0x88] sm:$0xff]
        %v247 = vld [vmem:[%s227 + $0x90] sm:$0xff]
        %v248 = vld [vmem:[%s227 + $0x98] sm:$0xff]
        %v249 = vld [vmem:[%s227 + $0xa0] sm:$0xff]
        %v250 = vld [vmem:[%s227 + $0xa8] sm:$0xff]
        %v251 = vld [vmem:[%s227 + $0xb0] sm:$0xff]
        %v252 = vld [vmem:[%s227 + $0xb8] sm:$0xff]
        %v253 = vld [vmem:[%s227 + $0xc0] sm:$0xff]
        %v254 = vld [vmem:[%s227 + $0xc8] sm:$0xff]
        %v255 = vld [vmem:[%s227 + $0xd0] sm:$0xff]
        %v256 = vld [vmem:[%s227 + $0xd8] sm:$0xff]
        %v257 = vld [vmem:[%s227 + $0xe0] sm:$0xff]
        %v258 = vld [vmem:[%s227 + $0xe8] sm:$0xff]
        %v259 = vld [vmem:[%s227 + $0xf0] sm:$0xff]
        %v260 = vld [vmem:[%s227 + $0xf8] sm:$0xff]
        %v261 = vld [vmem:[%s1] sm:$0xff]
        %v262 = vld [vmem:[%s1 + $0x8] sm:$0xff]
        %v263 = vld [vmem:[%s1 + $0x10] sm:$0xff]
        %v264 = vld [vmem:[%s1 + $0x18] sm:$0xff]
        %v265 = vld [vmem:[%s1 + $0x20] sm:$0xff]
        %v266 = vld [vmem:[%s1 + $0x28] sm:$0xff]
        %v267 = vld [vmem:[%s1 + $0x30] sm:$0xff]
        %v268 = vld [vmem:[%s1 + $0x38] sm:$0xff]
        %v269 = vld [vmem:[%s1 + $0x40] sm:$0xff]
        %v270 = vld [vmem:[%s1 + $0x48] sm:$0xff]
        %v271 = vld [vmem:[%s1 + $0x50] sm:$0xff]
        %v272 = vld [vmem:[%s1 + $0x58] sm:$0xff]
        %v273 = vld [vmem:[%s1 + $0x60] sm:$0xff]
        %v274 = vld [vmem:[%s1 + $0x68] sm:$0xff]
        %v275 = vld [vmem:[%s1 + $0x70] sm:$0xff]
        %v276 = vld [vmem:[%s1 + $0x78] sm:$0xff]
        %v277 = vld [vmem:[%s1 + $0x80] sm:$0xff]
        %v278 = vld [vmem:[%s1 + $0x88] sm:$0xff]
        %v279 = vld [vmem:[%s1 + $0x90] sm:$0xff]
        %v280 = vld [vmem:[%s1 + $0x98] sm:$0xff]
        %v281 = vld [vmem:[%s1 + $0xa0] sm:$0xff]
        %v282 = vld [vmem:[%s1 + $0xa8] sm:$0xff]
        %v283 = vld [vmem:[%s1 + $0xb0] sm:$0xff]
        %v284 = vld [vmem:[%s1 + $0xb8] sm:$0xff]
        %v285 = vld [vmem:[%s1 + $0xc0] sm:$0x3f]
        %v286 = vld [vmem:[%s2] sm:$0x1]
        %v288 = vlaneseq
        %v289 = vshrl.u32 %v288, 7
        %v290 = vsub.s32 0, %v289
        %v291 = vrot.slane %v286, %v290
        %vm293 = vcmask 572416
        %v295 = vsel %vm293, %v230, 0
        %v298 = vsel %vm293, %v232, 0
        %v301 = vsel %vm293, %v234, 0
        %v304 = vsel %vm293, %v236, 0
        %v307 = vsel %vm293, %v238, 0
        %v310 = vsel %vm293, %v240, 0
        %v313 = vsel %vm293, %v242, 0
        %v316 = vsel %vm293, %v244, 0
        %v319 = vsel %vm293, %v246, 0
        %v322 = vsel %vm293, %v248, 0
        %v325 = vsel %vm293, %v250, 0
        %v328 = vsel %vm293, %v252, 0
        %v331 = vsel %vm293, %v254, 0
        %v334 = vsel %vm293, %v256, 0
        %v337 = vsel %vm293, %v258, 0
        %v340 = vsel %vm293, %v260, 0
        %vm342 = vcmask 1045504
        %v344 = vsel %vm342, %v285, 0
        %346 = vmatprep.subr.mxu0 0.0
        %347 = vmatpush1.msra.mxu0 %v261
        %348 = vmatprep.subr.mxu0 0.0
        %349 = vmatpush1.msra.mxu0 %v262
        %350 = vmatprep.subr.mxu0 0.0
        %351 = vmatpush1.msra.mxu0 %v263
        %352 = vmatprep.subr.mxu0 0.0
        %353 = vmatpush1.msra.mxu0 %v264
        %354 = vmatprep.subr.mxu0 0.0
        %355 = vmatpush1.msra.mxu0 %v265
        %356 = vmatprep.subr.mxu0 0.0
        %357 = vmatpush1.msra.mxu0 %v266
        %358 = vmatprep.subr.mxu0 0.0
        %359 = vmatpush1.msra.mxu0 %v267
        %360 = vmatprep.subr.mxu0 0.0
        %361 = vmatpush1.msra.mxu0 %v268
        %362 = vmatprep.subr.mxu0 0.0
        %363 = vmatpush1.msra.mxu0 %v269
        %364 = vmatprep.subr.mxu0 0.0
        %365 = vmatpush1.msra.mxu0 %v270
        %366 = vmatprep.subr.mxu0 0.0
        %367 = vmatpush1.msra.mxu0 %v271
        %368 = vmatprep.subr.mxu0 0.0
        %369 = vmatpush1.msra.mxu0 %v272
        %370 = vmatprep.subr.mxu0 0.0
        %371 = vmatpush1.msra.mxu0 %v273
        %372 = vmatprep.subr.mxu0 0.0
        %373 = vmatpush1.msra.mxu0 %v274
        %374 = vmatprep.subr.mxu0 0.0
        %375 = vmatpush1.msra.mxu0 %v275
        %376 = vmatprep.subr.mxu0 0.0
        %377 = vmatpush1.msra.mxu0 %v276
        %378 = vmatprep.subr.mxu0 0.0
        %379 = vmatpush1.msra.mxu0 %v277
        %380 = vmatprep.subr.mxu0 0.0
        %381 = vmatpush1.msra.mxu0 %v278
        %382 = vmatprep.subr.mxu0 0.0
        %383 = vmatpush1.msra.mxu0 %v279
        %384 = vmatprep.subr.mxu0 0.0
        %385 = vmatpush1.msra.mxu0 %v280
        %386 = vmatprep.subr.mxu0 0.0
        %387 = vmatpush1.msra.mxu0 %v281
        %388 = vmatprep.subr.mxu0 0.0
        %389 = vmatpush1.msra.mxu0 %v282
        %390 = vmatprep.subr.mxu0 0.0
        %391 = vmatpush1.msra.mxu0 %v283
        %392 = vmatprep.subr.mxu0 0.0
        %393 = vmatpush1.msra.mxu0 %v284
        %394 = vmatprep.subr.mxu0 0.0
        %395 = vmatpush1.msra.mxu0 %v344
        %396 = vmatprep.subr.mxu0 0.0
        %397 = vmatpush1.msra.mxu0 0.0
        %398 = vmatprep.subr.mxu0 0.0
        %399 = vmatpush1.msra.mxu0 0.0
        %400 = vmatprep.subr.mxu0 0.0
        %401 = vmatpush1.msra.mxu0 0.0
        %402 = vmatprep.subr.mxu0 0.0
        %403 = vmatpush1.msra.mxu0 0.0
        %404 = vmatprep.subr.mxu0 0.0
        %405 = vmatpush1.msra.mxu0 0.0
        %406 = vmatprep.subr.mxu0 0.0
        %407 = vmatpush1.msra.mxu0 0.0
        %408 = vmatprep.subr.mxu0 0.0
        %409 = vmatpush1.msra.mxu0 0.0
        %410 = vmatprep.mubr.f32.mxu0 %v295
        %411 = vmatmul.mubr.f32.gmra.mrb[0].mxu0 %v229
        %v412 = vpop.f32.mrb[0].mxu0
        %v413 = vadd.f32 %v291, %v412
        %v414 = vpop.f32.mrb[0].mxu0
        %415 = vmatprep.mubr.f32.mxu0 %v298
        %416 = vmatmul.mubr.f32.gmra.mrb[0].mxu0 %v231
        %v417 = vpop.f32.mrb[0].mxu0
        %v418 = vadd.f32 %v291, %v417
        %v419 = vpop.f32.mrb[0].mxu0
        %420 = vmatprep.mubr.f32.mxu0 %v301
        %421 = vmatmul.mubr.f32.gmra.mrb[0].mxu0 %v233
        %v422 = vpop.f32.mrb[0].mxu0
        %v423 = vadd.f32 %v291, %v422
        %v424 = vpop.f32.mrb[0].mxu0
        %425 = vmatprep.mubr.f32.mxu0 %v304
        %426 = vmatmul.mubr.f32.gmra.mrb[0].mxu0 %v235
        %v427 = vpop.f32.mrb[0].mxu0
        %v428 = vadd.f32 %v291, %v427
        %v429 = vpop.f32.mrb[0].mxu0
        %430 = vmatprep.mubr.f32.mxu0 %v307
        %431 = vmatmul.mubr.f32.gmra.mrb[0].mxu0 %v237
        %v432 = vpop.f32.mrb[0].mxu0
        %v433 = vadd.f32 %v291, %v432
        %v434 = vpop.f32.mrb[0].mxu0
        %435 = vmatprep.mubr.f32.mxu0 %v310
        %436 = vmatmul.mubr.f32.gmra.mrb[0].mxu0 %v239
        %v437 = vpop.f32.mrb[0].mxu0
        %v438 = vadd.f32 %v291, %v437
        %v439 = vpop.f32.mrb[0].mxu0
        %440 = vmatprep.mubr.f32.mxu0 %v313
        %441 = vmatmul.mubr.f32.gmra.mrb[0].mxu0 %v241
        %v442 = vpop.f32.mrb[0].mxu0
        %v443 = vadd.f32 %v291, %v442
        %v444 = vpop.f32.mrb[0].mxu0
        %445 = vmatprep.mubr.f32.mxu0 %v316
        %446 = vmatmul.mubr.f32.gmra.mrb[0].mxu0 %v243
        %v447 = vpop.f32.mrb[0].mxu0
        %v448 = vadd.f32 %v291, %v447
        %v449 = vpop.f32.mrb[0].mxu0
        %450 = vmatprep.mubr.f32.mxu0 %v319
        %451 = vmatmul.mubr.f32.gmra.mrb[0].mxu0 %v245
        %v452 = vpop.f32.mrb[0].mxu0
        %v453 = vadd.f32 %v291, %v452
        %v454 = vpop.f32.mrb[0].mxu0
        %455 = vmatprep.mubr.f32.mxu0 %v322
        %456 = vmatmul.mubr.f32.gmra.mrb[0].mxu0 %v247
        %v457 = vpop.f32.mrb[0].mxu0
        %v458 = vadd.f32 %v291, %v457
        %v459 = vpop.f32.mrb[0].mxu0
        %460 = vmatprep.mubr.f32.mxu0 %v325
        %461 = vmatmul.mubr.f32.gmra.mrb[0].mxu0 %v249
        %v462 = vpop.f32.mrb[0].mxu0
        %v463 = vadd.f32 %v291, %v462
        %v464 = vpop.f32.mrb[0].mxu0
        %465 = vmatprep.mubr.f32.mxu0 %v328
        %466 = vmatmul.mubr.f32.gmra.mrb[0].mxu0 %v251
        %v467 = vpop.f32.mrb[0].mxu0
        %v468 = vadd.f32 %v291, %v467
        %v469 = vpop.f32.mrb[0].mxu0
        %470 = vmatprep.mubr.f32.mxu0 %v331
        %471 = vmatmul.mubr.f32.gmra.mrb[0].mxu0 %v253
        %v472 = vpop.f32.mrb[0].mxu0
        %v473 = vadd.f32 %v291, %v472
        %v474 = vpop.f32.mrb[0].mxu0
        %475 = vmatprep.mubr.f32.mxu0 %v334
        %476 = vmatmul.mubr.f32.gmra.mrb[0].mxu0 %v255
        %v477 = vpop.f32.mrb[0].mxu0
        %v478 = vadd.f32 %v291, %v477
        %v479 = vpop.f32.mrb[0].mxu0
        %480 = vmatprep.mubr.f32.mxu0 %v337
        %481 = vmatmul.mubr.f32.gmra.mrb[0].mxu0 %v257
        %v482 = vpop.f32.mrb[0].mxu0
        %v483 = vadd.f32 %v291, %v482
        %v484 = vpop.f32.mrb[0].mxu0
        %485 = vmatprep.mubr.f32.mxu0 %v340
        %486 = vmatmul.mubr.f32.gmra.mrb[0].mxu0 %v259
        %v487 = vpop.f32.mrb[0].mxu0
        %v488 = vadd.f32 %v291, %v487
        %v489 = vpop.f32.mrb[0].mxu0
        %490 = vdwg.mxu0
        %v491 = vxor.u32 %v413, 2147483648
        %v492 = vxor.u32 %v418, 2147483648
        %v493 = vxor.u32 %v423, 2147483648
        %v494 = vxor.u32 %v428, 2147483648
        %v495 = vxor.u32 %v433, 2147483648
        %v496 = vxor.u32 %v438, 2147483648
        %v497 = vxor.u32 %v443, 2147483648
        %v498 = vxor.u32 %v448, 2147483648
        %v499 = vxor.u32 %v453, 2147483648
        %v500 = vxor.u32 %v458, 2147483648
        %v501 = vxor.u32 %v463, 2147483648
        %v502 = vxor.u32 %v468, 2147483648
        %v503 = vxor.u32 %v473, 2147483648
        %v504 = vxor.u32 %v478, 2147483648
        %v505 = vxor.u32 %v483, 2147483648
        %v506 = vxor.u32 %v488, 2147483648
        %v507 = vmul.f32 %v491, 1.442695
        %v508 = vpow.pop %v507
        %v509 = vmul.f32 %v492, 1.442695
        %v510 = vpow.pop %v509
        %v511 = vmul.f32 %v493, 1.442695
        %v512 = vpow.pop %v511
        %v513 = vmul.f32 %v494, 1.442695
        %v514 = vpow.pop %v513
        %v515 = vmul.f32 %v495, 1.442695
        %v516 = vpow.pop %v515
        %v517 = vmul.f32 %v496, 1.442695
        %v518 = vpow.pop %v517
        %v519 = vmul.f32 %v497, 1.442695
        %v520 = vpow.pop %v519
        %v521 = vmul.f32 %v498, 1.442695
        %v522 = vpow.pop %v521
        %v523 = vmul.f32 %v499, 1.442695
        %v524 = vpow.pop %v523
        %v525 = vmul.f32 %v500, 1.442695
        %v526 = vpow.pop %v525
        %v527 = vmul.f32 %v501, 1.442695
        %v528 = vpow.pop %v527
        %v529 = vmul.f32 %v502, 1.442695
        %v530 = vpow.pop %v529
        %v531 = vmul.f32 %v503, 1.442695
        %v532 = vpow.pop %v531
        %v533 = vmul.f32 %v504, 1.442695
        %v534 = vpow.pop %v533
        %v535 = vmul.f32 %v505, 1.442695
        %v536 = vpow.pop %v535
        %v537 = vmul.f32 %v506, 1.442695
        %v538 = vpow.pop %v537
        %v539 = vadd.f32 %v508, 1.0
        %v540 = vadd.f32 %v510, 1.0
        %v541 = vadd.f32 %v512, 1.0
        %v542 = vadd.f32 %v514, 1.0
        %v543 = vadd.f32 %v516, 1.0
        %v544 = vadd.f32 %v518, 1.0
        %v545 = vadd.f32 %v520, 1.0
        %v546 = vadd.f32 %v522, 1.0
        %v547 = vadd.f32 %v524, 1.0
        %v548 = vadd.f32 %v526, 1.0
        %v549 = vadd.f32 %v528, 1.0
        %v550 = vadd.f32 %v530, 1.0
        %v551 = vadd.f32 %v532, 1.0
        %v552 = vadd.f32 %v534, 1.0
        %v553 = vadd.f32 %v536, 1.0
        %v554 = vadd.f32 %v538, 1.0
        %v555 = vrcp.pop %v539
        %v556 = vmul.f32 1.0, %v555
        %v557 = vrcp.pop %v540
        %v558 = vmul.f32 1.0, %v557
        %v559 = vrcp.pop %v541
        %v560 = vmul.f32 1.0, %v559
        %v561 = vrcp.pop %v542
        %v562 = vmul.f32 1.0, %v561
        %v563 = vrcp.pop %v543
        %v564 = vmul.f32 1.0, %v563
        %v565 = vrcp.pop %v544
        %v566 = vmul.f32 1.0, %v565
        %v567 = vrcp.pop %v545
        %v568 = vmul.f32 1.0, %v567
        %v569 = vrcp.pop %v546
        %v570 = vmul.f32 1.0, %v569
        %v571 = vrcp.pop %v547
        %v572 = vmul.f32 1.0, %v571
        %v573 = vrcp.pop %v548
        %v574 = vmul.f32 1.0, %v573
        %v575 = vrcp.pop %v549
        %v576 = vmul.f32 1.0, %v575
        %v577 = vrcp.pop %v550
        %v578 = vmul.f32 1.0, %v577
        %v579 = vrcp.pop %v551
        %v580 = vmul.f32 1.0, %v579
        %v581 = vrcp.pop %v552
        %v582 = vmul.f32 1.0, %v581
        %v583 = vrcp.pop %v553
        %v584 = vmul.f32 1.0, %v583
        %v585 = vrcp.pop %v554
        %v586 = vmul.f32 1.0, %v585
        %v587 = vld [vmem:[%s3] sm:$0x1]
        %v588 = vld [vmem:[#allocation2] sm:$0x1]
        %590 = vset.pattern.permute.xlu0 0
        %591 = vperm.xlu0 %590, %v588
        %v592 = vpop.permute.xlu0 %591
        %v594 = vlaneseq
        %v595 = vshrl.u32 %v594, 7
        %v596 = vsub.s32 0, %v595
        %v597 = vrot.slane %v592, %v596
        %vm598 = vcmask 261120
        %v600 = vsel %vm598, %v587, 0
        %v603 = vsel %vm598, %v556, 0
        %v606 = vsel %vm598, %v558, 0
        %v609 = vsel %vm598, %v560, 0
        %v612 = vsel %vm598, %v562, 0
        %v615 = vsel %vm598, %v564, 0
        %v618 = vsel %vm598, %v566, 0
        %v621 = vsel %vm598, %v568, 0
        %v624 = vsel %vm598, %v570, 0
        %v627 = vsel %vm598, %v572, 0
        %v630 = vsel %vm598, %v574, 0
        %v633 = vsel %vm598, %v576, 0
        %v636 = vsel %vm598, %v578, 0
        %v639 = vsel %vm598, %v580, 0
        %v642 = vsel %vm598, %v582, 0
        %v645 = vsel %vm598, %v584, 0
        %v648 = vsel %vm598, %v586, 0
        %650 = vmatprep.subr.mxu0 0.0
        %651 = vmatpush1.xpose.msra.mxu0 %v603
        %652 = vmatprep.subr.mxu0 0.0
        %653 = vmatpush1.xpose.msra.mxu0 %v606
        %654 = vmatprep.subr.mxu0 0.0
        %655 = vmatpush1.xpose.msra.mxu0 %v609
        %656 = vmatprep.subr.mxu0 0.0
        %657 = vmatpush1.xpose.msra.mxu0 %v612
        %658 = vmatprep.subr.mxu0 0.0
        %659 = vmatpush1.xpose.msra.mxu0 %v615
        %660 = vmatprep.subr.mxu0 0.0
        %661 = vmatpush1.xpose.msra.mxu0 %v618
        %662 = vmatprep.subr.mxu0 0.0
        %663 = vmatpush1.xpose.msra.mxu0 %v621
        %664 = vmatprep.subr.mxu0 0.0
        %665 = vmatpush1.xpose.msra.mxu0 %v624
        %666 = vmatprep.subr.mxu0 0.0
        %667 = vmatpush1.xpose.msra.mxu0 %v627
        %668 = vmatprep.subr.mxu0 0.0
        %669 = vmatpush1.xpose.msra.mxu0 %v630
        %670 = vmatprep.subr.mxu0 0.0
        %671 = vmatpush1.xpose.msra.mxu0 %v633
        %672 = vmatprep.subr.mxu0 0.0
        %673 = vmatpush1.xpose.msra.mxu0 %v636
        %674 = vmatprep.subr.mxu0 0.0
        %675 = vmatpush1.xpose.msra.mxu0 %v639
        %676 = vmatprep.subr.mxu0 0.0
        %677 = vmatpush1.xpose.msra.mxu0 %v642
        %678 = vmatprep.subr.mxu0 0.0
        %679 = vmatpush1.xpose.msra.mxu0 %v645
        %680 = vmatprep.subr.mxu0 0.0
        %681 = vmatpush1.xpose.msra.mxu0 %v648
        %682 = vmatprep.subr.mxu0 0.0
        %683 = vmatpush1.xpose.msra.mxu0 0.0
        %684 = vmatprep.subr.mxu0 0.0
        %685 = vmatpush1.xpose.msra.mxu0 0.0
        %686 = vmatprep.subr.mxu0 0.0
        %687 = vmatpush1.xpose.msra.mxu0 0.0
        %688 = vmatprep.subr.mxu0 0.0
        %689 = vmatpush1.xpose.msra.mxu0 0.0
        %690 = vmatprep.subr.mxu0 0.0
        %691 = vmatpush1.xpose.msra.mxu0 0.0
        %692 = vmatprep.subr.mxu0 0.0
        %693 = vmatpush1.xpose.msra.mxu0 0.0
        %694 = vmatprep.subr.mxu0 0.0
        %695 = vmatpush1.xpose.msra.mxu0 0.0
        %696 = vmatprep.subr.mxu0 0.0
        %697 = vmatpush1.xpose.msra.mxu0 0.0
        %698 = vmatprep.subr.mxu0 0.0
        %699 = vmatpush1.xpose.msra.mxu0 0.0
        %700 = vmatprep.subr.mxu0 0.0
        %701 = vmatpush1.xpose.msra.mxu0 0.0
        %702 = vmatprep.subr.mxu0 0.0
        %703 = vmatpush1.xpose.msra.mxu0 0.0
        %704 = vmatprep.subr.mxu0 0.0
        %705 = vmatpush1.xpose.msra.mxu0 0.0
        %706 = vmatprep.subr.mxu0 0.0
        %707 = vmatpush1.xpose.msra.mxu0 0.0
        %708 = vmatprep.subr.mxu0 0.0
        %709 = vmatpush1.xpose.msra.mxu0 0.0
        %710 = vmatprep.subr.mxu0 0.0
        %711 = vmatpush1.xpose.msra.mxu0 0.0
        %712 = vmatprep.subr.mxu0 0.0
        %713 = vmatpush1.xpose.msra.mxu0 0.0
        %714 = vmatprep.mubr.f32.mxu0 0.0
        %715 = vmatmul.mubr.f32.gmra.mrb[0].mxu0 %v600
        %v716 = vpop.f32.mrb[0].mxu0
        %v717 = vadd.f32 %v597, %v716
        %v718 = vpop.f32.mrb[0].mxu0
        %719 = vdwg.mxu0
        %v720 = vxor.u32 %v717, 2147483648
        %v721 = vmul.f32 %v720, 1.442695
        %v722 = vpow.pop %v721
        %v723 = vadd.f32 %v722, 1.0
        %v724 = vrcp.pop %v723
        %v725 = vmul.f32 1.0, %v724
        %726 = vst [vmem:[%s221] sm:$0x1] %v725
        %s727 = sand.u32 %s139, 1
        %s728 = scalar_lea.sflag [#allocation4], %s727
        %s729 = sand.u32 %s139, 1
        %s730 = scalar_lea.vmem [#allocation3], %s729
        // Predicated region
        $region41: #{value_func_forward.1} parent=39 // pred_check
          %p731 = pneg %p149
        $region42: #{value_func_forward.1} parent=39 // pred_check_branch
          %733 = sbr.rel (%p731) target = $region44
        $region43: #{value_func_forward.1} parent=39 // pred_region
          %s735 = ssub.s32 16, 16
          %736 = vsyncadd %s728, %s735
          %s737 = smul.addr %s21, 16
          %s738 = scalar_lea.hbm %s5, %s737
          %s740 = sshll.u32 %s730, 4
          %s741 = int_to_ptr.vmem [resolvable:$true] %s740
          %743 = dma.vmem_to_hbm [thread:$0]  %s741, 16, %s738, %s728
        $region44: #{value_func_forward.1} parent=39 // pred_fallthru
          _
      $region40: #{value_func_forward.1} parent=5 // pred_fallthru
        _
      %p744 = scmp.le.s32.totalorder 2, %s16
      // Predicated region
      $region45: #{value_func_forward.1} parent=5 // pred_check
        %p745 = pneg %p744
      $region46: #{value_func_forward.1} parent=5 // pred_check_branch
        %747 = sbr.rel (%p745) target = $region48
      $region47: #{value_func_forward.1} parent=5 // pred_region
        %s748 = ssub.s32 %s16, 2
        // Predicated region
        $region49: #{value_func_forward.1} parent=47 // pred_check
          %p749 = pneg %p155
        $region50: #{value_func_forward.1} parent=47 // pred_check_branch
          %751 = sbr.rel (%p749) target = $region52
        $region51: #{value_func_forward.1} parent=47 // pred_region
          %s752 = sand.u32 %s140, 1
          %s753 = scalar_lea.sflag [#allocation4], %s752
          %s754 = sand.u32 %s140, 1
          %s755 = scalar_lea.vmem [#allocation3], %s754
          %756 = dma.done %s753, 16
        $region52: #{value_func_forward.1} parent=47 // pred_fallthru
          _
      $region48: #{value_func_forward.1} parent=5 // pred_fallthru
        _
    $region6: #{value_func_forward.1} parent=1 // loop_footer
      %s20 = sadd.s32 1, %s16
    $region7: #{value_func_forward.1} parent=1 // loop_footer_branch
      %15 = sbr.rel target = $region3
    $region8: #{value_func_forward.1} parent=1 // loop_exit
      _
    %757 = vsyncpa [#allocation4], 1
    %s758 = scalar_lea.sflag [#allocation4], 1
    %759 = vsyncpa %s758, 1

</llo_original>
